<compile_context>
chip_gen: v7x
topology: tpu7x:2x2x1
jax: 0.10.0
libtpu: 0.0.40
codegen_flags: <defaults>
</compile_context>

<pallas_src>
import functools

import jax
import jax.numpy as jnp
from jax.experimental import pallas as pl
from jax.experimental.pallas import tpu as pltpu

_LANE = 128
_MIB = 1024 * 1024


def _cdiv(a, b):
    return -(-a // b)


def _round_up(a, b):
    return _cdiv(a, b) * b


def _sse_kernel(w_ref, b_ref, x_ref, o_ref):
    # w_ref: (C,)        f32, SMEM (Conv3d(C, 1, 1) weight, read as scalars)
    # b_ref: (1,)        f32, SMEM (bias)
    # x_ref: (Bb, C, TS) input tile, VMEM
    # o_ref: (Bb, C, TS) output tile, VMEM
    C = x_ref.shape[1]
    # 1x1x1 conv over channels: per-channel scalar MAC into a (Bb, 1, TS) f32
    # accumulator. Avoids materializing a full-block f32 product temp; C is a
    # compile-time constant so the loop unrolls statically, and the op is
    # HBM-bound so the extra sublane-slice loads are free.
    acc = x_ref[:, 0:1, :].astype(jnp.float32) * w_ref[0]
    for c in range(1, C):
        acc = acc + x_ref[:, c:c + 1, :].astype(jnp.float32) * w_ref[c]
    s = jax.nn.sigmoid(acc + b_ref[0])                       # (Bb, 1, TS) f32
    # Dominant elementwise work stays in the input dtype (bf16 stays bf16 on v6e/v7x).
    o_ref[...] = x_ref[...] * s.astype(o_ref.dtype)


def _plan_tiles(B, C, S, itemsize, budget, min_steps=4):
    """Pick (batch block bb, spatial tile ts, planned VMEM footprint in bytes).

    Footprint model per spatial element of a (bb, C, ts) tile (sublane-padded C):
      2x double-buffered input + 2x double-buffered output + 1x input-dtype temp
      (the gated product before the store) + ~3 sublane-padded f32 (bb, 1, ts)
      temporaries (conv accumulator / sigmoid / gate).
    """
    pack = max(8, 32 // itemsize)                 # sublane packing: 8 f32, 16 bf16, 32 i8
    c_pad = _round_up(C, pack)
    per_elem = 5 * c_pad * itemsize + 3 * 8 * 4   # bytes per spatial element (bb = 1)

    s_pad = _round_up(S, _LANE)
    max_ts = max(_LANE, (budget // per_elem) // _LANE * _LANE)

    if max_ts >= s_pad:
        # Whole flattened spatial extent per step; block the batch axis instead.
        # NOTE: if S < 128 the lane dim is under-utilized (masked partial stores);
        # acceptable here since such tensors are tiny.
        ts = S
        bb_cap = max(1, budget // (per_elem * s_pad))
        divisors = [d for d in range(min(B, bb_cap), 0, -1) if B % d == 0] or [1]
        bb = divisors[0]
        idx = 0
        # Keep >= min_steps grid iterations for pipeline overlap.
        while (B // bb) < min_steps and idx + 1 < len(divisors):
            idx += 1
            bb = divisors[idx]
        # v7x megacore: prefer an even number of grid steps (2 TensorCores).
        if B > bb and (B // bb) % 2 == 1:
            for d in divisors[idx + 1:]:
                if (B // d) % 2 == 0:
                    bb = d
                    break
    else:
        bb = 1
        n_min = max(_cdiv(s_pad, max_ts), _cdiv(min_steps, max(B, 1)))
        # Prefer the largest 128-multiple tile that divides S exactly (no masked
        # tail stores) while keeping at least n_min spatial steps.
        ts = 0
        for t in range(min(max_ts, s_pad), 0, -_LANE):
            if S % t == 0 and _cdiv(S, t) >= n_min:
                ts = t
                break
        if ts == 0:
            # No clean divisor: balance tile sizes so the tail block stays near-full.
            ts = max(_LANE, min(max_ts, _round_up(_cdiv(S, n_min), _LANE)))
        # v7x megacore: prefer an even total step count.
        if (B * _cdiv(S, ts)) % 2 == 1:
            for t in range(ts, _LANE - 1, -_LANE):
                if (B * _cdiv(S, t)) % 2 == 0:
                    ts = t
                    break

    footprint = per_elem * bb * _round_up(ts, _LANE)
    return bb, ts, footprint


def _vmem_capacity_bytes():
    """Per-core VMEM capacity; conservative fallback if the query is unavailable."""
    try:
        cap = int(getattr(pltpu.get_tpu_info(), "vmem_capacity_bytes", 0))
        if cap > 0:
            return cap
    except Exception:
        pass
    return 64 * _MIB          # v7x per-TensorCore size: safe lower bound everywhere


@functools.partial(jax.jit, static_argnames=("bb", "ts", "vmem_limit"))
def _sse_call(x, weight, bias, *, bb, ts, vmem_limit):
    B, C, D, H, W = x.shape
    S = D * H * W
    x_flat = x.reshape(B, C, S)
    w1d = weight.reshape(C).astype(jnp.float32)               # (C,)  -> SMEM scalars
    b1d = bias.reshape(1).astype(jnp.float32)                  # (1,)  -> SMEM scalar

    grid = (_cdiv(B, bb), _cdiv(S, ts))
    out_flat = pl.pallas_call(
        _sse_kernel,
        out_shape=jax.ShapeDtypeStruct((B, C, S), x.dtype),
        grid_spec=pltpu.PrefetchScalarGridSpec(
            num_scalar_prefetch=0,
            grid=grid,
            in_specs=[
                pl.BlockSpec(memory_space=pltpu.MemorySpace.SMEM),    # weight (C,)
                pl.BlockSpec(memory_space=pltpu.MemorySpace.SMEM),    # bias (1,)
                pl.BlockSpec((bb, C, ts), lambda b, s: (b, 0, s)),    # x tile
            ],
            out_specs=pl.BlockSpec((bb, C, ts), lambda b, s: (b, 0, s)),
        ),
        compiler_params=pltpu.CompilerParams(
            dimension_semantics=("parallel", "parallel"),
            vmem_limit_bytes=vmem_limit,
        ),
    )(w1d, b1d, x_flat)
    return out_flat.reshape(B, C, D, H, W)


def spatial_se_layer_3d(x, weight, bias, *, pipeline_budget_bytes=None):
    """x: (B, C, D, H, W); weight: (1, C, 1, 1, 1) from Conv3d(C, 1, 1); bias: (1,)."""
    B, C, D, H, W = x.shape
    S = D * H * W
    vmem_cap = _vmem_capacity_bytes()
    if pipeline_budget_bytes is None:
        # v7x: 64 MiB VMEM/TC and fast HBM -> large tiles to amortize per-step
        # overhead; v5e/v6e: 128 MiB VMEM -> take the free headroom.
        pipeline_budget_bytes = 40 * _MIB if vmem_cap <= 64 * _MIB else 56 * _MIB
    # Never plan a footprint the chip can't hold (also clamps caller budgets).
    pipeline_budget_bytes = int(max(64 * 1024,
                                    min(pipeline_budget_bytes, vmem_cap - 8 * _MIB)))

    bb, ts, footprint = _plan_tiles(B, C, S, x.dtype.itemsize, pipeline_budget_bytes)
    vmem_limit = int(min(vmem_cap, max(32 * _MIB, footprint + 16 * _MIB)))
    return _sse_call(x, weight, bias, bb=bb, ts=ts, vmem_limit=vmem_limit)


def _reference(x, weight, bias):
    # Pure-JAX f32 reference of the PyTorch forward (NCDHW, 1x1x1 conv).
    w = weight.reshape(-1).astype(jnp.float32)                     # (C,)
    xf = x.astype(jnp.float32)
    z = jnp.einsum("bcdhw,c->bdhw", xf, w) + bias.astype(jnp.float32)[0]
    s = jax.nn.sigmoid(z)[:, None, :, :, :]                        # (B, 1, D, H, W)
    return xf * s


def _run_case(key, B, C, D, H, W, dtype=jnp.float32, **kw):
    kx, kw_, kb = jax.random.split(key, 3)
    x = jax.random.normal(kx, (B, C, D, H, W), dtype=jnp.float32).astype(dtype)
    # Deterministic Conv3d(C, 1, 1) parameters (PyTorch-style uniform init).
    bound = 1.0 / float(C) ** 0.5
    weight = jax.random.uniform(kw_, (1, C, 1, 1, 1), jnp.float32, -bound, bound)
    bias = jax.random.uniform(kb, (1,), jnp.float32, -bound, bound)

    out = jax.block_until_ready(spatial_se_layer_3d(x, weight, bias, **kw))
    ref = _reference(x, weight, bias)
    assert out.shape == (B, C, D, H, W)
    assert out.dtype == dtype
    if dtype == jnp.float32:
        tol = dict(atol=1e-5, rtol=1e-5)
    else:  # bf16: gate cast + multiply in bf16, conv/sigmoid in f32
        tol = dict(atol=2e-2, rtol=2e-2)
    assert jnp.allclose(out.astype(jnp.float32), ref, **tol), "mismatch vs reference"


if __name__ == "__main__":
    key = jax.random.PRNGKey(0)
    k1, k2, k3, k4 = jax.random.split(key, 4)

    # 1) Canonical small case (B=2, C=4, 8^3): whole-spatial tile, batch-stepped grid.
    _run_case(k1, 2, 4, 8, 8, 8)
    # 2) Small spatial / larger batch: batch-blocked tiles (bb > 1), lane dim = full S.
    _run_case(k2, 16, 4, 4, 4, 4)
    # 3) Spatial extent not divisible by the tile: cdiv grid + clipped tail block
    #    (tiny pipeline budget forces ts < S so the tail path is exercised).
    _run_case(k3, 2, 4, 5, 7, 9, pipeline_budget_bytes=16 * 1024)
    # 4) bf16: exercises sublane packing (C=4 pads to 16 rows) and the bf16 gate path.
    _run_case(k4, 2, 4, 8, 8, 8, dtype=jnp.bfloat16)

    print("KERNEL_OK")
</pallas_src>

<mosaic_0001>
module attributes {stable_mosaic.version = 11 : i64} {
  func.func @_sse_kernel(%arg0: i32, %arg1: i32, %arg2: memref<4xf32, #tpu.memory_space<smem>>, %arg3: memref<1xf32, #tpu.memory_space<smem>>, %arg4: memref<1x4x512xf32, #tpu.memory_space<vmem>>, %arg5: memref<1x4x512xf32, #tpu.memory_space<vmem>>) attributes {dimension_semantics = [#tpu.dimension_semantics<parallel>, #tpu.dimension_semantics<parallel>], iteration_bounds = array<i64: 2, 1>, scalar_prefetch = 0 : i64, scratch_operands = 0 : i64, tpu.core_type = #tpu.core_type<tc>, window_params = [{transform_indices = @transform_0, window_bounds = array<i64: 4>}, {transform_indices = @transform_1, window_bounds = array<i64: 1>}, {transform_indices = @transform_2, window_bounds = array<i64: 1, 4, 512>}, {transform_indices = @transform_3, window_bounds = array<i64: 1, 4, 512>}]} {
    %c0 = arith.constant 0 : index
    %c0_0 = arith.constant 0 : index
    %c0_1 = arith.constant 0 : index
    %0 = vector.load %arg4[%c0, %c0_0, %c0_1] : memref<1x4x512xf32, #tpu.memory_space<vmem>>, vector<1x1x512xf32>
    %c0_2 = arith.constant 0 : index
    %1 = memref.load %arg2[%c0_2] : memref<4xf32, #tpu.memory_space<smem>>
    %2 = vector.broadcast %1 : f32 to vector<1x1x512xf32>
    %3 = arith.mulf %0, %2 : vector<1x1x512xf32>
    %c0_3 = arith.constant 0 : index
    %c1 = arith.constant 1 : index
    %c0_4 = arith.constant 0 : index
    %4 = vector.load %arg4[%c0_3, %c1, %c0_4] : memref<1x4x512xf32, #tpu.memory_space<vmem>>, vector<1x1x512xf32>
    %c1_5 = arith.constant 1 : index
    %5 = memref.load %arg2[%c1_5] : memref<4xf32, #tpu.memory_space<smem>>
    %6 = vector.broadcast %5 : f32 to vector<1x1x512xf32>
    %7 = arith.mulf %4, %6 : vector<1x1x512xf32>
    %8 = arith.addf %3, %7 : vector<1x1x512xf32>
    %c0_6 = arith.constant 0 : index
    %c2 = arith.constant 2 : index
    %c0_7 = arith.constant 0 : index
    %9 = vector.load %arg4[%c0_6, %c2, %c0_7] : memref<1x4x512xf32, #tpu.memory_space<vmem>>, vector<1x1x512xf32>
    %c2_8 = arith.constant 2 : index
    %10 = memref.load %arg2[%c2_8] : memref<4xf32, #tpu.memory_space<smem>>
    %11 = vector.broadcast %10 : f32 to vector<1x1x512xf32>
    %12 = arith.mulf %9, %11 : vector<1x1x512xf32>
    %13 = arith.addf %8, %12 : vector<1x1x512xf32>
    %c0_9 = arith.constant 0 : index
    %c3 = arith.constant 3 : index
    %c0_10 = arith.constant 0 : index
    %14 = vector.load %arg4[%c0_9, %c3, %c0_10] : memref<1x4x512xf32, #tpu.memory_space<vmem>>, vector<1x1x512xf32>
    %c3_11 = arith.constant 3 : index
    %15 = memref.load %arg2[%c3_11] : memref<4xf32, #tpu.memory_space<smem>>
    %16 = vector.broadcast %15 : f32 to vector<1x1x512xf32>
    %17 = arith.mulf %14, %16 : vector<1x1x512xf32>
    %18 = arith.addf %13, %17 : vector<1x1x512xf32>
    %c0_12 = arith.constant 0 : index
    %19 = memref.load %arg3[%c0_12] : memref<1xf32, #tpu.memory_space<smem>>
    %20 = vector.broadcast %19 : f32 to vector<1x1x512xf32>
    %21 = arith.addf %18, %20 : vector<1x1x512xf32>
    %22 = arith.negf %21 : vector<1x1x512xf32>
    %23 = math.exp %22 : vector<1x1x512xf32>
    %cst = arith.constant 1.000000e+00 : f32
    %24 = vector.broadcast %cst : f32 to vector<1x1x512xf32>
    %25 = arith.addf %24, %23 : vector<1x1x512xf32>
    %26 = arith.divf %24, %25 : vector<1x1x512xf32>
    %c0_13 = arith.constant 0 : index
    %c0_14 = arith.constant 0 : index
    %c0_15 = arith.constant 0 : index
    %27 = vector.load %arg4[%c0_13, %c0_14, %c0_15] : memref<1x4x512xf32, #tpu.memory_space<vmem>>, vector<1x4x512xf32>
    %28 = vector.broadcast %26 : vector<1x1x512xf32> to vector<1x4x512xf32>
    %29 = arith.mulf %27, %28 : vector<1x4x512xf32>
    %c0_16 = arith.constant 0 : index
    %c0_17 = arith.constant 0 : index
    %c0_18 = arith.constant 0 : index
    %30 = vector.load %arg5[%c0_16, %c0_17, %c0_18] : memref<1x4x512xf32, #tpu.memory_space<vmem>>, vector<1x4x512xf32>
    tpu.vector_store %arg5[%c0_16, %c0_17, %c0_18], %29 {strides = array<i32>} : memref<1x4x512xf32, #tpu.memory_space<vmem>>, vector<1x4x512xf32>,
    return
  }
  func.func @transform_0(%arg0: i32, %arg1: i32) -> i32 {
    %c0_i32 = arith.constant 0 : i32
    %c0_i32_0 = arith.constant 0 : i32
    return %c0_i32 : i32
  }
  func.func @transform_1(%arg0: i32, %arg1: i32) -> i32 {
    %c0_i32 = arith.constant 0 : i32
    %c0_i32_0 = arith.constant 0 : i32
    return %c0_i32 : i32
  }
  func.func @transform_2(%arg0: i32, %arg1: i32) -> (i32, i32, i32) {
    %c0_i32 = arith.constant 0 : i32
    %c0_i32_0 = arith.constant 0 : i32
    return %arg0, %c0_i32, %arg1 : i32, i32, i32
  }
  func.func @transform_3(%arg0: i32, %arg1: i32) -> (i32, i32, i32) {
    %c0_i32 = arith.constant 0 : i32
    %c0_i32_0 = arith.constant 0 : i32
    return %arg0, %c0_i32, %arg1 : i32, i32, i32
  }
}

</mosaic_0001>

<llo_original>
// kernel: _sse_call.1
$region0: #{_sse_call.1}
  #allocation0 [shape = 'u32[]', space=smem, size = 0x4, offset = 0x4, fixed_abs, tag = 'smem constant byte address 0x4 - core index']
  #allocation1 [shape = 'u32[144,128]{1,0:T(1,128)}', space=vmem, size = 0x12000, scoped, tag = 'internal scratch']
  #allocation2 [shape = 'f32[1]{0:T(128)S(6)}', space=smem, size = 0x200, scoped, tag = 'scoped memory for _sse_call.1']
  %s0 = inlined_call_operand.vmem [shape: f32[4], index: 0, kind: input, shape index: {}]
  %s1 = inlined_call_operand.<no memory space> [shape: f32[1], index: 1, kind: input, shape index: {}]
  %s2 = inlined_call_operand.vmem [shape: f32[2,4,512], index: 2, kind: input, shape index: {}]
  %s3 = inlined_call_operand.vmem [shape: f32[2,4,512], index: 3, kind: output, shape index: {}]
  %s4 = sld [smem:[#allocation0]]
  $region49: #{_sse_call.1} parent=0
    _
  %s6 = ssub.s32 1, %s4
  %s7 = scalar_select 0, %s6, %s4
  %8 = sst [smem:[#allocation2]] %s1
  $region1: #{_sse_call.1} parent=0
    #allocation3 [shape = 'u8[512]{0}', space=smem, size = 0x200, scoped, tag = 'input window, operand 0, single buffered']
    #allocation4 [shape = 's32[2]{0}', space=sflag, size = 0x8, scoped, tag = 'scoped memory for _sse_call.1']
    %9 = vsyncpa [#allocation4], 0
    loop: start=0, step=1, limit=4
    $region2: #{_sse_call.1} parent=1 // loop_pre_header
      _
    $region3: #{_sse_call.1} parent=1 // loop_header
      %s11 = sphi 0, %s15
      %p12 = scmp.ge.s32.totalorder %s11, 4
      %s18 = sphi 0, %s30
      %s19 = sphi 0, %s26
      %s20 = sphi 0, %s18
      %s21 = sphi 0, %s19
      %s22 = sphi 0, %s20
      %s23 = sphi 0, %s21
      %s31 = sphi 0, %s31
      %s33 = sphi 0, %s31
      %s34 = sphi 0, %s33
      %s48 = sphi 0, %s34
      %s52 = sphi 0, %s52
      %s54 = sphi 0, %s52
      %s55 = sphi 0, %s54
      %s69 = sphi 0, %s55
      %s77 = sphi 0, %s79
      %s80 = sphi 0, %s77
      %s81 = sphi 0, %s80
      %s97 = sphi 0, %s81
      %s105 = sphi 0, %s107
      %s108 = sphi 0, %s105
      %s109 = sphi 0, %s108
      %s125 = sphi 0, %s109
    $region4: #{_sse_call.1} parent=1 // loop_header_branch
      %14 = sbr.rel (%p12) target = $region8
    $region5: #{_sse_call.1} parent=1 // loop_body
      %s16 = ssub.s32 %s11, 1
      %s17 = ssub.s32 %s11, 2
      %s24 = sadd.s32 1, %s19
      %p25 = scmp.ge.s32.totalorder %s24, 1
      %s26 = scalar_select %p25, 0, %s24
      %s27 = sadd.s32 1, %s18
      %s28 = scalar_select %p25, %s27, %s18
      %p29 = scmp.ge.s32.totalorder %s28, 2
      %s30 = scalar_select %p29, 0, %s28
      %s32 = sadd.s32 %s31, 1
      %p35 = scmp.eq.s32.totalorder %s11, 1
      %p36 = scmp.ne.s32.totalorder %s31, %s33
      %p37 = scmp.eq.s32.totalorder %s11, 0
      %p38 = por %p36, %p37
      %p39 = scmp.ne.s32.totalorder %s31, %s33
      %p40 = scmp.eq.s32.totalorder %s16, 1
      %p41 = por %p39, %p40
      %p42 = scmp.ne.s32.totalorder %s33, %s34
      %p43 = scmp.eq.s32.totalorder %s16, 0
      %p44 = por %p42, %p43
      %p45 = scmp.ne.s32.totalorder %s33, %s34
      %p46 = scmp.eq.s32.totalorder %s17, 1
      %p47 = por %p45, %p46
      %p49 = scmp.ne.s32.totalorder %s34, %s48
      %p50 = scmp.eq.s32.totalorder %s17, 0
      %p51 = por %p49, %p50
      %s53 = sadd.s32 %s52, 1
      %p56 = scmp.eq.s32.totalorder %s11, 1
      %p57 = scmp.ne.s32.totalorder %s52, %s54
      %p58 = scmp.eq.s32.totalorder %s11, 0
      %p59 = por %p57, %p58
      %p60 = scmp.ne.s32.totalorder %s52, %s54
      %p61 = scmp.eq.s32.totalorder %s16, 1
      %p62 = por %p60, %p61
      %p63 = scmp.ne.s32.totalorder %s54, %s55
      %p64 = scmp.eq.s32.totalorder %s16, 0
      %p65 = por %p63, %p64
      %p66 = scmp.ne.s32.totalorder %s54, %s55
      %p67 = scmp.eq.s32.totalorder %s17, 1
      %p68 = por %p66, %p67
      %p70 = scmp.ne.s32.totalorder %s55, %s69
      %p71 = scmp.eq.s32.totalorder %s17, 0
      %p72 = por %p70, %p71
      %s73 = ssub.s32 %s18, %s30
      %s74 = ssub.s32 %s19, %s26
      %s75 = sor.u32 %s73, %s74
      %p76 = scmp.eq.s32.totalorder %s75, 0
      %s78 = sadd.s32 %s77, 1
      %s79 = scalar_select %p76, %s77, %s78
      %p82 = pneg %p76
      %p83 = scmp.eq.s32.totalorder %s11, 1
      %p84 = por %p82, %p83
      %p85 = scmp.ne.s32.totalorder %s77, %s80
      %p86 = scmp.eq.s32.totalorder %s11, 0
      %p87 = por %p85, %p86
      %p88 = scmp.ne.s32.totalorder %s77, %s80
      %p89 = scmp.eq.s32.totalorder %s16, 1
      %p90 = por %p88, %p89
      %p91 = scmp.ne.s32.totalorder %s80, %s81
      %p92 = scmp.eq.s32.totalorder %s16, 0
      %p93 = por %p91, %p92
      %p94 = scmp.ne.s32.totalorder %s80, %s81
      %p95 = scmp.eq.s32.totalorder %s17, 1
      %p96 = por %p94, %p95
      %p98 = scmp.ne.s32.totalorder %s81, %s97
      %p99 = scmp.eq.s32.totalorder %s17, 0
      %p100 = por %p98, %p99
      %s101 = ssub.s32 %s18, %s30
      %s102 = ssub.s32 %s19, %s26
      %s103 = sor.u32 %s101, %s102
      %p104 = scmp.eq.s32.totalorder %s103, 0
      %s106 = sadd.s32 %s105, 1
      %s107 = scalar_select %p104, %s105, %s106
      %p110 = pneg %p104
      %p111 = scmp.eq.s32.totalorder %s11, 1
      %p112 = por %p110, %p111
      %p113 = scmp.ne.s32.totalorder %s105, %s108
      %p114 = scmp.eq.s32.totalorder %s11, 0
      %p115 = por %p113, %p114
      %p116 = scmp.ne.s32.totalorder %s105, %s108
      %p117 = scmp.eq.s32.totalorder %s16, 1
      %p118 = por %p116, %p117
      %p119 = scmp.ne.s32.totalorder %s108, %s109
      %p120 = scmp.eq.s32.totalorder %s16, 0
      %p121 = por %p119, %p120
      %p122 = scmp.ne.s32.totalorder %s108, %s109
      %p123 = scmp.eq.s32.totalorder %s17, 1
      %p124 = por %p122, %p123
      %p126 = scmp.ne.s32.totalorder %s109, %s125
      %p127 = scmp.eq.s32.totalorder %s17, 0
      %p128 = por %p126, %p127
      %p129 = scmp.le.s32.totalorder 1, %s11
      %p130 = scmp.lt.s32.totalorder %s11, 3
      %p131 = pnand %p129, %p130
      %p132 = pneg %p131
      // Predicated region
      $region9: #{_sse_call.1} parent=5 // pred_check
        _
      $region10: #{_sse_call.1} parent=5 // pred_check_branch
        %134 = sbr.rel (%p131) target = $region12
      $region11: #{_sse_call.1} parent=5 // pred_region
        %s135 = ssub.s32 %s11, 1
        // Predicated region
        $region13: #{_sse_call.1} parent=11 // pred_check
          %p136 = pneg %p44
        $region14: #{_sse_call.1} parent=11 // pred_check_branch
          %138 = sbr.rel (%p136) target = $region16
        $region15: #{_sse_call.1} parent=11 // pred_region
          %s140 = ssub.s32 16, 16
          %141 = vsyncadd [#allocation4], %s140
          %s143 = sshll.u32 %s0, 4
          %s144 = int_to_ptr.vmem [resolvable:$true] %s143
          %146 = dma.vmem_to_smem %s144, 16, [#allocation3], [#allocation4]
        $region16: #{_sse_call.1} parent=11 // pred_fallthru
          _
        // Predicated region
        $region17: #{_sse_call.1} parent=11 // pred_check
          %p147 = pneg %p65
        $region18: #{_sse_call.1} parent=11 // pred_check_branch
          %149 = sbr.rel (%p147) target = $region20
        $region19: #{_sse_call.1} parent=11 // pred_region
          _
        $region20: #{_sse_call.1} parent=11 // pred_fallthru
          _
      $region12: #{_sse_call.1} parent=5 // pred_fallthru
        _
      %p150 = scmp.lt.s32.totalorder %s11, 2
      // Predicated region
      $region21: #{_sse_call.1} parent=5 // pred_check
        %p151 = pneg %p150
      $region22: #{_sse_call.1} parent=5 // pred_check_branch
        %153 = sbr.rel (%p151) target = $region24
      $region23: #{_sse_call.1} parent=5 // pred_region
        // Predicated region
        $region25: #{_sse_call.1} parent=23 // pred_check
          %p154 = pneg %p87
        $region26: #{_sse_call.1} parent=23 // pred_check_branch
          %156 = sbr.rel (%p154) target = $region28
        $region27: #{_sse_call.1} parent=23 // pred_region
          %s157 = smul.u32 4, %s19
          %p158 = scmp.lt.s32.totalorder %s18, 1
          %s159 = scalar_select %p158, %s18, 1
          %p160 = scmp.lt.s32.totalorder %s157, 3
          %s161 = scalar_select %p160, %s157, 3
          %s162 = smul.addr %s159, 4
          %s163 = sadd.s32 %s161, %s162
          %s164 = smul.addr %s163, 4
          %s165 = scalar_lea.vmem %s2, %s164
          %s166 = smul.u32 4, %s19
        $region28: #{_sse_call.1} parent=23 // pred_fallthru
          _
      $region24: #{_sse_call.1} parent=5 // pred_fallthru
        _
      %p167 = scmp.le.s32.totalorder 1, %s11
      %p168 = scmp.lt.s32.totalorder %s11, 3
      %p169 = pnand %p167, %p168
      %p170 = pneg %p169
      // Predicated region
      $region29: #{_sse_call.1} parent=5 // pred_check
        _
      $region30: #{_sse_call.1} parent=5 // pred_check_branch
        %172 = sbr.rel (%p169) target = $region32
      $region31: #{_sse_call.1} parent=5 // pred_region
        %s173 = ssub.s32 %s11, 1
        // Predicated region
        $region33: #{_sse_call.1} parent=31 // pred_check
          %p174 = pneg %p44
        $region34: #{_sse_call.1} parent=31 // pred_check_branch
          %176 = sbr.rel (%p174) target = $region36
        $region35: #{_sse_call.1} parent=31 // pred_region
          %177 = dma.done [#allocation4], 16
        $region36: #{_sse_call.1} parent=31 // pred_fallthru
          _
        %178 = sfence
        %p179 = pneg %p44
        %p180 = pneg %p41
        %p181 = pneg %p65
        %p182 = pneg %p62
        %s183 = smul.u32 4, %s21
        %p184 = scmp.lt.s32.totalorder %s20, 1
        %s185 = scalar_select %p184, %s20, 1
        %p186 = scmp.lt.s32.totalorder %s183, 3
        %s187 = scalar_select %p186, %s183, 3
        %s188 = smul.addr %s185, 4
        %s189 = sadd.s32 %s187, %s188
        %s190 = smul.addr %s189, 4
        %s191 = scalar_lea.vmem %s2, %s190
        %p192 = pneg %p93
        %p193 = pneg %p90
        %p194 = pneg %p121
        %p195 = pneg %p118
        %s196 = smul.u32 4, %s21
        %p197 = scmp.lt.s32.totalorder %s20, 1
        %s198 = scalar_select %p197, %s20, 1
        %p199 = scmp.lt.s32.totalorder %s196, 3
        %s200 = scalar_select %p199, %s196, 3
        %s201 = smul.addr %s198, 4
        %s202 = sadd.s32 %s200, %s201
        %s203 = smul.addr %s202, 4
        %s204 = scalar_lea.vmem %s3, %s203
        %s205 = smul.u32 4, %s21
        %p206 = scmp.lt.s32.totalorder %s20, 1
        %s207 = scalar_select %p206, %s20, 1
        %p208 = scmp.lt.s32.totalorder %s205, 3
        %s209 = scalar_select %p208, %s205, 3
        %s210 = smul.addr %s207, 4
        %s211 = sadd.s32 %s209, %s210
        %s212 = smul.addr %s211, 4
        %s213 = scalar_lea.vmem %s2, %s212
        %s214 = smul.u32 4, %s21
        %s215 = smul.u32 4, %s21
        %p216 = scmp.lt.s32.totalorder %s20, 1
        %s217 = scalar_select %p216, %s20, 1
        %p218 = scmp.lt.s32.totalorder %s215, 3
        %s219 = scalar_select %p218, %s215, 3
        %s220 = smul.addr %s217, 4
        %s221 = sadd.s32 %s219, %s220
        %s222 = smul.addr %s221, 4
        %s223 = scalar_lea.vmem %s3, %s222
        %s224 = smul.u32 4, %s21
        %v225 = vld [vmem:[%s213] ss:$4 sm:$0xf]
        %s226 = sld [smem:[#allocation3]]
        %v227 = vstv %s226
        %v228 = vmul.f32 %v225, %v227
        %s229 = scalar_lea.vmem %s213, 1
        %v230 = vld [vmem:[%s229] ss:$4 sm:$0xf]
        %s231 = sld [smem:[#allocation3 + $0x1]]
        %v232 = vstv %s231
        %v233 = vmul.f32 %v230, %v232
        %v234 = vadd.f32 %v228, %v233
        %s235 = scalar_lea.vmem %s213, 2
        %v236 = vld [vmem:[%s235] ss:$4 sm:$0xf]
        %s237 = sld [smem:[#allocation3 + $0x2]]
        %v238 = vstv %s237
        %v239 = vmul.f32 %v236, %v238
        %v240 = vadd.f32 %v234, %v239
        %s241 = scalar_lea.vmem %s213, 3
        %v242 = vld [vmem:[%s241] ss:$4 sm:$0xf]
        %s243 = sld [smem:[#allocation3 + $0x3]]
        %v244 = vstv %s243
        %v245 = vmul.f32 %v242, %v244
        %v246 = vadd.f32 %v240, %v245
        %s247 = sld [smem:[#allocation2]]
        %v248 = vstv %s247
        %v249 = vadd.f32 %v246, %v248
        %v250 = vxor.u32 %v249, 2147483648
        %v251 = vmul.f32 %v250, 1.442695
        %v252 = vpow.pop %v251
        %v253 = vadd.f32 %v252, 1.0
        %v254 = vrcp.pop %v253
        %v255 = vmul.f32 1.0, %v254
        %v256 = vld [vmem:[%s213] sm:$0xff]
        %v257 = vld [vmem:[%s213 + $0x8] sm:$0xff]
        %v259 = vlaneseq
        %v260 = vshrl.u32 %v259, 7
        %v261 = vsub.s32 0, %v260
        %v262 = vrot.slane %v255, %v261
        %v263 = vlaneseq
        %v264 = vshrl.u32 %v263, 7
        %v265 = vsub.s32 1, %v264
        %v266 = vrot.slane %v255, %v265
        %v267 = vlaneseq
        %v268 = vshrl.u32 %v267, 7
        %v269 = vsub.s32 2, %v268
        %v270 = vrot.slane %v255, %v269
        %v271 = vlaneseq
        %v272 = vshrl.u32 %v271, 7
        %v273 = vsub.s32 3, %v272
        %v274 = vrot.slane %v255, %v273
        %v275 = vcombine.low %v262, %v266
        %v276 = vcombine.low %v270, %v274
        %v279 = vmul.f32 %v256, %v275
        %v280 = vmul.f32 %v257, %v276
        %281 = vst [vmem:[%s223] sm:$0xff] %v279
        %282 = vst [vmem:[%s223 + $0x8] sm:$0xff] %v280
        %s283 = smul.u32 4, %s21
        %p284 = scmp.lt.s32.totalorder %s20, 1
        %s285 = scalar_select %p284, %s20, 1
        %p286 = scmp.lt.s32.totalorder %s283, 3
        %s287 = scalar_select %p286, %s283, 3
        %s288 = smul.addr %s285, 4
        %s289 = sadd.s32 %s287, %s288
        %s290 = smul.addr %s289, 4
        %s291 = scalar_lea.vmem %s3, %s290
        // Predicated region
        $region37: #{_sse_call.1} parent=31 // pred_check
          %p292 = pneg %p118
        $region38: #{_sse_call.1} parent=31 // pred_check_branch
          %294 = sbr.rel (%p292) target = $region40
        $region39: #{_sse_call.1} parent=31 // pred_region
          %s295 = smul.u32 4, %s21
        $region40: #{_sse_call.1} parent=31 // pred_fallthru
          _
      $region32: #{_sse_call.1} parent=5 // pred_fallthru
        _
      %p296 = scmp.le.s32.totalorder 2, %s11
      // Predicated region
      $region41: #{_sse_call.1} parent=5 // pred_check
        %p297 = pneg %p296
      $region42: #{_sse_call.1} parent=5 // pred_check_branch
        %299 = sbr.rel (%p297) target = $region44
      $region43: #{_sse_call.1} parent=5 // pred_region
        %s300 = ssub.s32 %s11, 2
        // Predicated region
        $region45: #{_sse_call.1} parent=43 // pred_check
          %p301 = pneg %p124
        $region46: #{_sse_call.1} parent=43 // pred_check_branch
          %303 = sbr.rel (%p301) target = $region48
        $region47: #{_sse_call.1} parent=43 // pred_region
          %s304 = smul.u32 4, %s23
          %p305 = scmp.lt.s32.totalorder %s22, 1
          %s306 = scalar_select %p305, %s22, 1
          %p307 = scmp.lt.s32.totalorder %s304, 3
          %s308 = scalar_select %p307, %s304, 3
          %s309 = smul.addr %s306, 4
          %s310 = sadd.s32 %s308, %s309
          %s311 = smul.addr %s310, 4
          %s312 = scalar_lea.vmem %s3, %s311
        $region48: #{_sse_call.1} parent=43 // pred_fallthru
          _
      $region44: #{_sse_call.1} parent=5 // pred_fallthru
        _
    $region6: #{_sse_call.1} parent=1 // loop_footer
      %s15 = sadd.s32 1, %s11
    $region7: #{_sse_call.1} parent=1 // loop_footer_branch
      %10 = sbr.rel target = $region3
    $region8: #{_sse_call.1} parent=1 // loop_exit
      _
    %313 = vsyncpa [#allocation4], 1
    %s314 = scalar_lea.sflag [#allocation4], 1
    %315 = vsyncpa %s314, 1

</llo_original>
